<compile_context>
chip_gen: v7x
topology: tpu7x:2x2x1
jax: 0.10.0
libtpu: 0.0.40
codegen_flags: <defaults>
</compile_context>

<pallas_src>
import functools

import jax
import jax.numpy as jnp
from jax.experimental import pallas as pl
from jax.experimental.pallas import tpu as pltpu


def _gated_attn_kernel(x_ref, wab_ref, bab_ref, wc_ref, bc_ref, out_ref, *,
                       dp, vpu_proj):
    # x tile: (block_n, L) f32 from HBM -> bf16 in-register for the MXU.
    x = x_ref[...].astype(jnp.bfloat16)

    # Fused [Wa | Wb] matmul: one 2*Dp-wide MXU pass, f32 accumulation.
    z = jnp.dot(x, wab_ref[...], preferred_element_type=jnp.float32) + bab_ref[...]
    a = jnp.tanh(z[:, :dp])                       # EUP, f32
    b = jax.nn.sigmoid(z[:, dp:])                 # EUP, f32
    gated = a * b                                 # VPU, f32 (block_n, Dp)

    if vpu_proj:
        # C == 1: broadcast-multiply by the wc row and reduce over lanes (XLU);
        # avoids a third MXU weight push.  Padded hidden cols of `gated` are
        # exactly 0, so the padded wc entries never contribute.
        out = jnp.sum(gated * wc_ref[...], axis=-1, keepdims=True) + bc_ref[...]
    else:
        # General C: small MXU matmul with unpadded class dim.
        out = jnp.dot(gated.astype(jnp.bfloat16), wc_ref[...],
                      preferred_element_type=jnp.float32) + bc_ref[...]

    # Out block is (block_n, C) with full-dim C (masked store for tiny C);
    # lane-dense transposed (C, block_n) layout left as a follow-up to measure.
    out_ref[...] = out.astype(out_ref.dtype)


def _pad2(a, rows, cols):
    return jnp.pad(a, ((0, rows - a.shape[0]), (0, cols - a.shape[1])))


def _choose_block_n(n, max_block_n=512):
    """Multiple of 8, capped, and small enough to give >= 2 grid steps (v7x)."""
    max_block_n = max(8, (max_block_n // 8) * 8)
    if n <= 8:
        return 8
    half = -(-n // 2)            # ceil(n / 2)
    half = -(-half // 8) * 8     # round up to a sublane multiple
    return min(max_block_n, half)


def attn_net_gated_forward(x, params, *, max_block_n=512):
    """Returns (A, x) like the PyTorch module.

    x: [N, L] float32
    params: dict with wa [L,D], ba [1,D], wb [L,D], bb [1,D], wc [D,C], bc [1,C]
    """
    N, L = x.shape
    D = params["wa"].shape[1]
    C = params["wc"].shape[1]

    Dp = 128 * pl.cdiv(D, 128)            # hidden padded to MXU lane width
    block_n = _choose_block_n(N, max_block_n)
    grid = (pl.cdiv(N, block_n),)

    # Fused, zero-padded weights (tiny, one-time).  Padded hidden columns give
    # tanh(0)*sigmoid(0) = 0, so they never contaminate the final projection.
    wab = jnp.concatenate(
        [_pad2(params["wa"], L, Dp), _pad2(params["wb"], L, Dp)],
        axis=1).astype(jnp.bfloat16)                            # (L, 2*Dp)
    bab = jnp.concatenate(
        [_pad2(params["ba"], 1, Dp), _pad2(params["bb"], 1, Dp)],
        axis=1).astype(jnp.float32)                             # (1, 2*Dp)
    bc = params["bc"].astype(jnp.float32)                       # (1, C)

    vpu_proj = (C == 1)
    if vpu_proj:
        wc_in = _pad2(params["wc"].T, C, Dp).astype(jnp.float32)    # (1, Dp)
        wc_spec = pl.BlockSpec((1, Dp), lambda i: (0, 0))
    else:
        wc_in = _pad2(params["wc"], Dp, C).astype(jnp.bfloat16)     # (Dp, C)
        wc_spec = pl.BlockSpec((Dp, C), lambda i: (0, 0))

    kernel = functools.partial(_gated_attn_kernel, dp=Dp, vpu_proj=vpu_proj)

    A = pl.pallas_call(
        kernel,
        out_shape=jax.ShapeDtypeStruct((N, C), jnp.float32),
        grid_spec=pltpu.PrefetchScalarGridSpec(
            num_scalar_prefetch=0,
            grid=grid,
            in_specs=[
                pl.BlockSpec((block_n, L), lambda i: (i, 0)),   # x tile (f32)
                pl.BlockSpec((L, 2 * Dp), lambda i: (0, 0)),    # [Wa|Wb] resident
                pl.BlockSpec((1, 2 * Dp), lambda i: (0, 0)),    # [ba|bb]
                wc_spec,                                        # Wc
                pl.BlockSpec((1, C), lambda i: (0, 0)),         # bc
            ],
            out_specs=pl.BlockSpec((block_n, C), lambda i: (i, 0)),
        ),
        compiler_params=pltpu.CompilerParams(
            dimension_semantics=("parallel",),
            vmem_limit_bytes=32 * 1024 * 1024,
        ),
    )(x, wab, bab, wc_in, bc)

    return A.astype(x.dtype), x


def init_params(key, L, D, n_classes):
    """Deterministic init mimicking nn.Linear default (uniform +-1/sqrt(fan_in))."""
    ks = jax.random.split(key, 6)
    sa = 1.0 / jnp.sqrt(L)
    sc = 1.0 / jnp.sqrt(D)
    return {
        "wa": jax.random.uniform(ks[0], (L, D), jnp.float32, -sa, sa),
        "ba": jax.random.uniform(ks[1], (1, D), jnp.float32, -sa, sa),
        "wb": jax.random.uniform(ks[2], (L, D), jnp.float32, -sa, sa),
        "bb": jax.random.uniform(ks[3], (1, D), jnp.float32, -sa, sa),
        "wc": jax.random.uniform(ks[4], (D, n_classes), jnp.float32, -sc, sc),
        "bc": jax.random.uniform(ks[5], (1, n_classes), jnp.float32, -sc, sc),
    }


def _reference_f32(x, p):
    a = jnp.tanh(x @ p["wa"] + p["ba"])
    b = jax.nn.sigmoid(x @ p["wb"] + p["bb"])
    return (a * b) @ p["wc"] + p["bc"]


def _reference_matched(x, p):
    # Same precision path as the kernel: bf16 MXU inputs, f32 accumulation,
    # f32 elementwise, f32 final projection (tight-tolerance check).
    xb = x.astype(jnp.bfloat16)
    za = jnp.dot(xb, p["wa"].astype(jnp.bfloat16),
                 preferred_element_type=jnp.float32) + p["ba"]
    zb = jnp.dot(xb, p["wb"].astype(jnp.bfloat16),
                 preferred_element_type=jnp.float32) + p["bb"]
    gated = jnp.tanh(za) * jax.nn.sigmoid(zb)
    return gated @ p["wc"] + p["bc"]


if __name__ == "__main__":
    # TODO(synk): dropout branch (p=0.25) not implemented; module default is
    # dropout=False and eval-mode dropout is identity anyway.
    # Smallish shapes consistent with the module; ragged N, non-128 D and C=1
    # exercise padding, partial-block masking and the VPU projection path.
    # block_n ends up 152 -> grid (2,), so both v7x TensorCores get a tile.
    N, L, D, n_classes = 300, 512, 96, 1
    key = jax.random.PRNGKey(0)
    kx, kp = jax.random.split(key)
    x = jax.random.normal(kx, (N, L), dtype=jnp.float32)
    params = init_params(kp, L, D, n_classes)

    A, x_out = attn_net_gated_forward(x, params)
    A = jax.block_until_ready(A)
    x_out = jax.block_until_ready(x_out)

    assert A.shape == (N, n_classes)
    assert x_out.shape == (N, L)
    assert jnp.array_equal(x_out, x)
    assert not jnp.any(jnp.isnan(A))

    # Tight check against a precision-matched reference, loose vs pure f32.
    A_match = _reference_matched(x, params)
    A_f32 = _reference_f32(x, params)
    assert jnp.allclose(A, A_match, atol=2e-3, rtol=2e-3)
    assert jnp.allclose(A, A_f32, atol=5e-2, rtol=5e-2)

    print("KERNEL_OK")
</pallas_src>

<mosaic_0001>
module attributes {stable_mosaic.version = 11 : i64} {
  func.func @_gated_attn_kernel(%arg0: i32, %arg1: memref<152x512xf32, #tpu.memory_space<vmem>>, %arg2: memref<512x256xbf16, #tpu.memory_space<vmem>>, %arg3: memref<1x256xf32, #tpu.memory_space<vmem>>, %arg4: memref<1x128xf32, #tpu.memory_space<vmem>>, %arg5: memref<1x1xf32, #tpu.memory_space<vmem>>, %arg6: memref<152x1xf32, #tpu.memory_space<vmem>>) attributes {dimension_semantics = [#tpu.dimension_semantics<parallel>], iteration_bounds = array<i64: 2>, scalar_prefetch = 0 : i64, scratch_operands = 0 : i64, tpu.core_type = #tpu.core_type<tc>, window_params = [{transform_indices = @transform_0, window_bounds = array<i64: 152, 512>}, {pipeline_mode = #tpu.pipeline_mode<synchronous>, transform_indices = @transform_1, window_bounds = array<i64: 512, 256>}, {pipeline_mode = #tpu.pipeline_mode<synchronous>, transform_indices = @transform_2, window_bounds = array<i64: 1, 256>}, {pipeline_mode = #tpu.pipeline_mode<synchronous>, transform_indices = @transform_3, window_bounds = array<i64: 1, 128>}, {pipeline_mode = #tpu.pipeline_mode<synchronous>, transform_indices = @transform_4, window_bounds = array<i64: 1, 1>}, {transform_indices = @transform_5, window_bounds = array<i64: 152, 1>}]} {
    %c0 = arith.constant 0 : index
    %c0_0 = arith.constant 0 : index
    %0 = vector.load %arg1[%c0, %c0_0] : memref<152x512xf32, #tpu.memory_space<vmem>>, vector<152x512xf32>
    %1 = arith.truncf %0 : vector<152x512xf32> to vector<152x512xbf16>
    %c0_1 = arith.constant 0 : index
    %c0_2 = arith.constant 0 : index
    %2 = vector.load %arg2[%c0_1, %c0_2] : memref<512x256xbf16, #tpu.memory_space<vmem>>, vector<512x256xbf16>
    %cst = arith.constant dense<0.000000e+00> : vector<152x256xf32>
    %3 = tpu.matmul %1, %2, %cst {dimension_numbers = #tpu.dot_dimension_numbers<[1], [0], [0], [1], [0, 0, 1, 1], [], []>} : vector<152x512xbf16>, vector<512x256xbf16>, vector<152x256xf32> -> vector<152x256xf32>
    %c0_3 = arith.constant 0 : index
    %c0_4 = arith.constant 0 : index
    %4 = vector.load %arg3[%c0_3, %c0_4] : memref<1x256xf32, #tpu.memory_space<vmem>>, vector<1x256xf32>
    %5 = vector.broadcast %4 : vector<1x256xf32> to vector<152x256xf32>
    %6 = arith.addf %3, %5 : vector<152x256xf32>
    %7 = vector.extract_strided_slice %6 {offsets = [0, 0], sizes = [152, 128], strides = [1, 1]} : vector<152x256xf32> to vector<152x128xf32>
    %8 = math.tanh %7 : vector<152x128xf32>
    %9 = vector.extract_strided_slice %6 {offsets = [0, 128], sizes = [152, 128], strides = [1, 1]} : vector<152x256xf32> to vector<152x128xf32>
    %10 = arith.negf %9 : vector<152x128xf32>
    %11 = math.exp %10 : vector<152x128xf32>
    %cst_5 = arith.constant 1.000000e+00 : f32
    %12 = vector.broadcast %cst_5 : f32 to vector<152x128xf32>
    %13 = arith.addf %12, %11 : vector<152x128xf32>
    %14 = arith.divf %12, %13 : vector<152x128xf32>
    %15 = arith.mulf %8, %14 : vector<152x128xf32>
    %c0_6 = arith.constant 0 : index
    %c0_7 = arith.constant 0 : index
    %16 = vector.load %arg4[%c0_6, %c0_7] : memref<1x128xf32, #tpu.memory_space<vmem>>, vector<1x128xf32>
    %17 = vector.broadcast %16 : vector<1x128xf32> to vector<152x128xf32>
    %18 = arith.mulf %15, %17 : vector<152x128xf32>
    %cst_8 = arith.constant dense<0.000000e+00> : vector<152xf32>
    %19 = vector.multi_reduction <add>, %18, %cst_8 [1] : vector<152x128xf32> to vector<152xf32>
    %20 = vector.shape_cast %19 : vector<152xf32> to vector<152x1xf32>
    %c0_9 = arith.constant 0 : index
    %c0_10 = arith.constant 0 : index
    %21 = vector.load %arg5[%c0_9, %c0_10] : memref<1x1xf32, #tpu.memory_space<vmem>>, vector<1x1xf32>
    %22 = vector.broadcast %21 : vector<1x1xf32> to vector<152x1xf32>
    %23 = arith.addf %20, %22 : vector<152x1xf32>
    %c0_11 = arith.constant 0 : index
    %c0_12 = arith.constant 0 : index
    %24 = vector.load %arg6[%c0_11, %c0_12] : memref<152x1xf32, #tpu.memory_space<vmem>>, vector<152x1xf32>
    tpu.vector_store %arg6[%c0_11, %c0_12], %23 {strides = array<i32>} : memref<152x1xf32, #tpu.memory_space<vmem>>, vector<152x1xf32>,
    return
  }
  func.func @transform_0(%arg0: i32) -> (i32, i32) {
    %c0_i32 = arith.constant 0 : i32
    %c0_i32_0 = arith.constant 0 : i32
    return %arg0, %c0_i32 : i32, i32
  }
  func.func @transform_1(%arg0: i32) -> (i32, i32) {
    %c0_i32 = arith.constant 0 : i32
    %c0_i32_0 = arith.constant 0 : i32
    %c0_i32_1 = arith.constant 0 : i32
    return %c0_i32, %c0_i32_0 : i32, i32
  }
  func.func @transform_2(%arg0: i32) -> (i32, i32) {
    %c0_i32 = arith.constant 0 : i32
    %c0_i32_0 = arith.constant 0 : i32
    %c0_i32_1 = arith.constant 0 : i32
    return %c0_i32, %c0_i32_0 : i32, i32
  }
  func.func @transform_3(%arg0: i32) -> (i32, i32) {
    %c0_i32 = arith.constant 0 : i32
    %c0_i32_0 = arith.constant 0 : i32
    %c0_i32_1 = arith.constant 0 : i32
    return %c0_i32, %c0_i32_0 : i32, i32
  }
  func.func @transform_4(%arg0: i32) -> (i32, i32) {
    %c0_i32 = arith.constant 0 : i32
    %c0_i32_0 = arith.constant 0 : i32
    %c0_i32_1 = arith.constant 0 : i32
    return %c0_i32, %c0_i32_0 : i32, i32
  }
  func.func @transform_5(%arg0: i32) -> (i32, i32) {
    %c0_i32 = arith.constant 0 : i32
    %c0_i32_0 = arith.constant 0 : i32
    return %arg0, %c0_i32 : i32, i32
  }
}

</mosaic_0001>

<llo_original>
// kernel: tpu_custom_call.1
$region0: #{tpu_custom_call.1}
  #allocation0 [shape = 'u32[]', space=smem, size = 0x4, offset = 0x4, fixed_abs, tag = 'smem constant byte address 0x4 - core index']
  #allocation1 [shape = 'u32[144,128]{1,0:T(1,128)}', space=vmem, size = 0x12000, scoped, tag = 'internal scratch']
  #allocation2 [shape = 'f32[1,1]{1,0:T(1,128)S(1)}', space=vmem, size = 0x200, scoped, tag = 'scoped memory for tpu_custom_call.1']
  %s0 = inlined_call_operand.hbm [shape: f32[300,512], index: 0, kind: input, shape index: {}]
  %s1 = inlined_call_operand.hbm [shape: bf16[512,256], index: 1, kind: input, shape index: {}]
  %s2 = inlined_call_operand.vmem [shape: f32[1,256], index: 2, kind: input, shape index: {}]
  %s3 = inlined_call_operand.vmem [shape: f32[1,128], index: 3, kind: input, shape index: {}]
  %s4 = inlined_call_operand.<no memory space> [shape: f32[1,1], index: 4, kind: input, shape index: {}]
  %s5 = inlined_call_operand.vmem [shape: f32[300,1], index: 5, kind: output, shape index: {}]
  %s6 = sld [smem:[#allocation0]]
  $region61: #{tpu_custom_call.1} parent=0
    _
  %s8 = ssub.s32 1, %s6
  %s9 = scalar_select 0, %s8, %s6
  %v10 = vstv %s4
  %11 = vst [vmem:[#allocation2] sm:$0x1] %v10
  $region1: #{tpu_custom_call.1} parent=0
    #allocation3 [shape = 'u8[622592]{0}', space=vmem, size = 0x98000, scoped, tag = 'input window, operand 0']
    #allocation4 [shape = 's32[2]{0}', space=sflag, size = 0x8, scoped, tag = 'scoped memory for tpu_custom_call.1']
    #allocation5 [shape = 'u8[262144]{0}', space=vmem, size = 0x40000, scoped, tag = 'input window, operand 1, single buffered']
    #allocation6 [shape = 's32[1]{0}', space=sflag, size = 0x4, scoped, tag = 'scoped memory for tpu_custom_call.1']
    %12 = vsyncpa [#allocation4], 0
    %s13 = scalar_lea.sflag [#allocation4], 1
    %14 = vsyncpa %s13, 0
    %15 = vsyncpa [#allocation6], 0
    loop: start=0, step=1, limit=4
    $region2: #{tpu_custom_call.1} parent=1 // loop_pre_header
      _
    $region3: #{tpu_custom_call.1} parent=1 // loop_header
      %s17 = sphi 0, %s21
      %p18 = scmp.ge.s32.totalorder %s17, 4
      %s27 = sphi 0, %s29
      %s30 = sphi 0, %s27
      %s31 = sphi 0, %s30
      %s47 = sphi 0, %s31
      %s51 = sphi 0, %s51
      %s53 = sphi 0, %s51
      %s54 = sphi 0, %s53
      %s68 = sphi 0, %s54
      %s72 = sphi 0, %s72
      %s74 = sphi 0, %s72
      %s75 = sphi 0, %s74
      %s89 = sphi 0, %s75
      %s93 = sphi 0, %s93
      %s95 = sphi 0, %s93
      %s96 = sphi 0, %s95
      %s110 = sphi 0, %s96
      %s114 = sphi 0, %s114
      %s116 = sphi 0, %s114
      %s117 = sphi 0, %s116
      %s131 = sphi 0, %s117
      %s137 = sphi 0, %s139
      %s140 = sphi 0, %s137
      %s141 = sphi 0, %s140
      %s157 = sphi 0, %s141
    $region4: #{tpu_custom_call.1} parent=1 // loop_header_branch
      %20 = sbr.rel (%p18) target = $region8
    $region5: #{tpu_custom_call.1} parent=1 // loop_body
      %s22 = ssub.s32 %s17, 1
      %s23 = ssub.s32 %s17, 2
      %s24 = sadd.s32 %s17, 1
      %s25 = ssub.s32 %s17, %s24
      %p26 = scmp.eq.s32.totalorder %s25, 0
      %s28 = sadd.s32 %s27, 1
      %s29 = scalar_select %p26, %s27, %s28
      %p32 = pneg %p26
      %p33 = scmp.eq.s32.totalorder %s17, 1
      %p34 = por %p32, %p33
      %p35 = scmp.ne.s32.totalorder %s27, %s30
      %p36 = scmp.eq.s32.totalorder %s17, 0
      %p37 = por %p35, %p36
      %p38 = scmp.ne.s32.totalorder %s27, %s30
      %p39 = scmp.eq.s32.totalorder %s22, 1
      %p40 = por %p38, %p39
      %p41 = scmp.ne.s32.totalorder %s30, %s31
      %p42 = scmp.eq.s32.totalorder %s22, 0
      %p43 = por %p41, %p42
      %p44 = scmp.ne.s32.totalorder %s30, %s31
      %p45 = scmp.eq.s32.totalorder %s23, 1
      %p46 = por %p44, %p45
      %p48 = scmp.ne.s32.totalorder %s31, %s47
      %p49 = scmp.eq.s32.totalorder %s23, 0
      %p50 = por %p48, %p49
      %s52 = sadd.s32 %s51, 1
      %p55 = scmp.eq.s32.totalorder %s17, 1
      %p56 = scmp.ne.s32.totalorder %s51, %s53
      %p57 = scmp.eq.s32.totalorder %s17, 0
      %p58 = por %p56, %p57
      %p59 = scmp.ne.s32.totalorder %s51, %s53
      %p60 = scmp.eq.s32.totalorder %s22, 1
      %p61 = por %p59, %p60
      %p62 = scmp.ne.s32.totalorder %s53, %s54
      %p63 = scmp.eq.s32.totalorder %s22, 0
      %p64 = por %p62, %p63
      %p65 = scmp.ne.s32.totalorder %s53, %s54
      %p66 = scmp.eq.s32.totalorder %s23, 1
      %p67 = por %p65, %p66
      %p69 = scmp.ne.s32.totalorder %s54, %s68
      %p70 = scmp.eq.s32.totalorder %s23, 0
      %p71 = por %p69, %p70
      %s73 = sadd.s32 %s72, 1
      %p76 = scmp.eq.s32.totalorder %s17, 1
      %p77 = scmp.ne.s32.totalorder %s72, %s74
      %p78 = scmp.eq.s32.totalorder %s17, 0
      %p79 = por %p77, %p78
      %p80 = scmp.ne.s32.totalorder %s72, %s74
      %p81 = scmp.eq.s32.totalorder %s22, 1
      %p82 = por %p80, %p81
      %p83 = scmp.ne.s32.totalorder %s74, %s75
      %p84 = scmp.eq.s32.totalorder %s22, 0
      %p85 = por %p83, %p84
      %p86 = scmp.ne.s32.totalorder %s74, %s75
      %p87 = scmp.eq.s32.totalorder %s23, 1
      %p88 = por %p86, %p87
      %p90 = scmp.ne.s32.totalorder %s75, %s89
      %p91 = scmp.eq.s32.totalorder %s23, 0
      %p92 = por %p90, %p91
      %s94 = sadd.s32 %s93, 1
      %p97 = scmp.eq.s32.totalorder %s17, 1
      %p98 = scmp.ne.s32.totalorder %s93, %s95
      %p99 = scmp.eq.s32.totalorder %s17, 0
      %p100 = por %p98, %p99
      %p101 = scmp.ne.s32.totalorder %s93, %s95
      %p102 = scmp.eq.s32.totalorder %s22, 1
      %p103 = por %p101, %p102
      %p104 = scmp.ne.s32.totalorder %s95, %s96
      %p105 = scmp.eq.s32.totalorder %s22, 0
      %p106 = por %p104, %p105
      %p107 = scmp.ne.s32.totalorder %s95, %s96
      %p108 = scmp.eq.s32.totalorder %s23, 1
      %p109 = por %p107, %p108
      %p111 = scmp.ne.s32.totalorder %s96, %s110
      %p112 = scmp.eq.s32.totalorder %s23, 0
      %p113 = por %p111, %p112
      %s115 = sadd.s32 %s114, 1
      %p118 = scmp.eq.s32.totalorder %s17, 1
      %p119 = scmp.ne.s32.totalorder %s114, %s116
      %p120 = scmp.eq.s32.totalorder %s17, 0
      %p121 = por %p119, %p120
      %p122 = scmp.ne.s32.totalorder %s114, %s116
      %p123 = scmp.eq.s32.totalorder %s22, 1
      %p124 = por %p122, %p123
      %p125 = scmp.ne.s32.totalorder %s116, %s117
      %p126 = scmp.eq.s32.totalorder %s22, 0
      %p127 = por %p125, %p126
      %p128 = scmp.ne.s32.totalorder %s116, %s117
      %p129 = scmp.eq.s32.totalorder %s23, 1
      %p130 = por %p128, %p129
      %p132 = scmp.ne.s32.totalorder %s117, %s131
      %p133 = scmp.eq.s32.totalorder %s23, 0
      %p134 = por %p132, %p133
      %s135 = ssub.s32 %s17, %s24
      %p136 = scmp.eq.s32.totalorder %s135, 0
      %s138 = sadd.s32 %s137, 1
      %s139 = scalar_select %p136, %s137, %s138
      %p142 = pneg %p136
      %p143 = scmp.eq.s32.totalorder %s17, 1
      %p144 = por %p142, %p143
      %p145 = scmp.ne.s32.totalorder %s137, %s140
      %p146 = scmp.eq.s32.totalorder %s17, 0
      %p147 = por %p145, %p146
      %p148 = scmp.ne.s32.totalorder %s137, %s140
      %p149 = scmp.eq.s32.totalorder %s22, 1
      %p150 = por %p148, %p149
      %p151 = scmp.ne.s32.totalorder %s140, %s141
      %p152 = scmp.eq.s32.totalorder %s22, 0
      %p153 = por %p151, %p152
      %p154 = scmp.ne.s32.totalorder %s140, %s141
      %p155 = scmp.eq.s32.totalorder %s23, 1
      %p156 = por %p154, %p155
      %p158 = scmp.ne.s32.totalorder %s141, %s157
      %p159 = scmp.eq.s32.totalorder %s23, 0
      %p160 = por %p158, %p159
      %p161 = scmp.le.s32.totalorder 1, %s17
      %p162 = scmp.lt.s32.totalorder %s17, 3
      %p163 = pnand %p161, %p162
      %p164 = pneg %p163
      // Predicated region
      $region9: #{tpu_custom_call.1} parent=5 // pred_check
        _
      $region10: #{tpu_custom_call.1} parent=5 // pred_check_branch
        %166 = sbr.rel (%p163) target = $region12
      $region11: #{tpu_custom_call.1} parent=5 // pred_region
        %s167 = ssub.s32 %s17, 1
        // Predicated region
        $region13: #{tpu_custom_call.1} parent=11 // pred_check
          %p168 = pneg %p64
        $region14: #{tpu_custom_call.1} parent=11 // pred_check_branch
          %170 = sbr.rel (%p168) target = $region16
        $region15: #{tpu_custom_call.1} parent=11 // pred_region
          %s172 = ssub.s32 8192, 8192
          %173 = vsyncadd [#allocation6], %s172
          %s174 = sshll.u32 [#allocation5], 4
          %s175 = int_to_ptr.vmem [resolvable:$true] %s174
          %180 = dma.hbm_to_vmem [thread:$0]  %s1, 8192, %s175, [#allocation6], 128, 128, 8
        $region16: #{tpu_custom_call.1} parent=11 // pred_fallthru
          _
        // Predicated region
        $region17: #{tpu_custom_call.1} parent=11 // pred_check
          %p181 = pneg %p85
        $region18: #{tpu_custom_call.1} parent=11 // pred_check_branch
          %183 = sbr.rel (%p181) target = $region20
        $region19: #{tpu_custom_call.1} parent=11 // pred_region
          _
        $region20: #{tpu_custom_call.1} parent=11 // pred_fallthru
          _
        // Predicated region
        $region21: #{tpu_custom_call.1} parent=11 // pred_check
          %p184 = pneg %p106
        $region22: #{tpu_custom_call.1} parent=11 // pred_check_branch
          %186 = sbr.rel (%p184) target = $region24
        $region23: #{tpu_custom_call.1} parent=11 // pred_region
          _
        $region24: #{tpu_custom_call.1} parent=11 // pred_fallthru
          _
        // Predicated region
        $region25: #{tpu_custom_call.1} parent=11 // pred_check
          %p187 = pneg %p127
        $region26: #{tpu_custom_call.1} parent=11 // pred_check_branch
          %189 = sbr.rel (%p187) target = $region28
        $region27: #{tpu_custom_call.1} parent=11 // pred_region
          _
        $region28: #{tpu_custom_call.1} parent=11 // pred_fallthru
          _
      $region12: #{tpu_custom_call.1} parent=5 // pred_fallthru
        _
      %p190 = scmp.lt.s32.totalorder %s17, 2
      // Predicated region
      $region29: #{tpu_custom_call.1} parent=5 // pred_check
        %p191 = pneg %p190
      $region30: #{tpu_custom_call.1} parent=5 // pred_check_branch
        %193 = sbr.rel (%p191) target = $region32
      $region31: #{tpu_custom_call.1} parent=5 // pred_region
        // Predicated region
        $region33: #{tpu_custom_call.1} parent=31 // pred_check
          %p194 = pneg %p37
        $region34: #{tpu_custom_call.1} parent=31 // pred_check_branch
          %196 = sbr.rel (%p194) target = $region36
        $region35: #{tpu_custom_call.1} parent=31 // pred_region
          %s197 = sand.u32 %s27, 1
          %s198 = scalar_lea.sflag [#allocation4], %s197
          %s199 = sand.u32 %s27, 1
          %s200 = smul.addr %s199, 608
          %s201 = scalar_lea.vmem [#allocation3], %s200
          %s202 = smul.u32 19, %s17
          %s204 = ssub.s32 9728, 9728
          %205 = vsyncadd %s198, %s204
          %s206 = smul.addr %s202, 4
          %s207 = smul.addr %s206, 128
          %s208 = scalar_lea.hbm %s0, %s207
          %s209 = sshll.u32 %s201, 4
          %s210 = int_to_ptr.vmem [resolvable:$true] %s209
          %215 = dma.hbm_to_vmem [thread:$0]  %s208, 9728, %s210, %s198, 512, 512, 32
        $region36: #{tpu_custom_call.1} parent=31 // pred_fallthru
          _
      $region32: #{tpu_custom_call.1} parent=5 // pred_fallthru
        _
      %p216 = scmp.le.s32.totalorder 1, %s17
      %p217 = scmp.lt.s32.totalorder %s17, 3
      %p218 = pnand %p216, %p217
      %p219 = pneg %p218
      // Predicated region
      $region37: #{tpu_custom_call.1} parent=5 // pred_check
        _
      $region38: #{tpu_custom_call.1} parent=5 // pred_check_branch
        %221 = sbr.rel (%p218) target = $region40
      $region39: #{tpu_custom_call.1} parent=5 // pred_region
        %s222 = ssub.s32 %s17, 1
        %s223 = sand.u32 %s30, 1
        %s224 = scalar_lea.sflag [#allocation4], %s223
        %s225 = sand.u32 %s30, 1
        %s226 = smul.addr %s225, 608
        %s227 = scalar_lea.vmem [#allocation3], %s226
        // Predicated region
        $region41: #{tpu_custom_call.1} parent=39 // pred_check
          %p228 = pneg %p43
        $region42: #{tpu_custom_call.1} parent=39 // pred_check_branch
          %230 = sbr.rel (%p228) target = $region44
        $region43: #{tpu_custom_call.1} parent=39 // pred_region
          %231 = dma.done %s224, 9728
        $region44: #{tpu_custom_call.1} parent=39 // pred_fallthru
          _
        // Predicated region
        $region45: #{tpu_custom_call.1} parent=39 // pred_check
          %p232 = pneg %p64
        $region46: #{tpu_custom_call.1} parent=39 // pred_check_branch
          %234 = sbr.rel (%p232) target = $region48
        $region47: #{tpu_custom_call.1} parent=39 // pred_region
          %235 = dma.done [#allocation6], 8192
        $region48: #{tpu_custom_call.1} parent=39 // pred_fallthru
          _
        %s236 = sand.u32 %s30, 1
        %s237 = scalar_lea.sflag [#allocation4], %s236
        %s238 = sand.u32 %s30, 1
        %s239 = smul.addr %s238, 608
        %s240 = scalar_lea.vmem [#allocation3], %s239
        %p241 = pneg %p43
        %p242 = pneg %p40
        %p243 = pneg %p64
        %p244 = pneg %p61
        %p245 = pneg %p85
        %p246 = pneg %p82
        %p247 = pneg %p106
        %p248 = pneg %p103
        %p249 = pneg %p127
        %p250 = pneg %p124
        %p251 = pneg %p153
        %p252 = pneg %p150
        %s253 = smul.u32 19, %s22
        %p254 = scmp.lt.s32.totalorder %s253, 37
        %s255 = scalar_select %p254, %s253, 37
        %s256 = smul.addr %s255, 8
        %s257 = scalar_lea.vmem %s5, %s256
        %s258 = smul.u32 19, %s22
        %s259 = smul.u32 19, %s22
        %p260 = scmp.lt.s32.totalorder %s259, 37
        %s261 = scalar_select %p260, %s259, 37
        %s262 = smul.addr %s261, 8
        %s263 = scalar_lea.vmem %s5, %s262
        %s264 = smul.u32 19, %s22
        %v265 = vld [vmem:[%s227] sm:$0xff]
        %v266 = vld [vmem:[%s227 + $0x8] sm:$0xff]
        %v267 = vld [vmem:[%s227 + $0x10] sm:$0xff]
        %v268 = vld [vmem:[%s227 + $0x18] sm:$0xff]
        %v269 = vld [vmem:[%s227 + $0x20] sm:$0xff]
        %v270 = vld [vmem:[%s227 + $0x28] sm:$0xff]
        %v271 = vld [vmem:[%s227 + $0x30] sm:$0xff]
        %v272 = vld [vmem:[%s227 + $0x38] sm:$0xff]
        %v273 = vld [vmem:[%s227 + $0x40] sm:$0xff]
        %v274 = vld [vmem:[%s227 + $0x48] sm:$0xff]
        %v275 = vld [vmem:[%s227 + $0x50] sm:$0xff]
        %v276 = vld [vmem:[%s227 + $0x58] sm:$0xff]
        %v277 = vld [vmem:[%s227 + $0x60] sm:$0xff]
        %v278 = vld [vmem:[%s227 + $0x68] sm:$0xff]
        %v279 = vld [vmem:[%s227 + $0x70] sm:$0xff]
        %v280 = vld [vmem:[%s227 + $0x78] sm:$0xff]
        %v281 = vld [vmem:[%s227 + $0x80] sm:$0xff]
        %v282 = vld [vmem:[%s227 + $0x88] sm:$0xff]
        %v283 = vld [vmem:[%s227 + $0x90] sm:$0xff]
        %v284 = vld [vmem:[%s227 + $0x98] sm:$0xff]
        %v285 = vld [vmem:[%s227 + $0xa0] sm:$0xff]
        %v286 = vld [vmem:[%s227 + $0xa8] sm:$0xff]
        %v287 = vld [vmem:[%s227 + $0xb0] sm:$0xff]
        %v288 = vld [vmem:[%s227 + $0xb8] sm:$0xff]
        %v289 = vld [vmem:[%s227 + $0xc0] sm:$0xff]
        %v290 = vld [vmem:[%s227 + $0xc8] sm:$0xff]
        %v291 = vld [vmem:[%s227 + $0xd0] sm:$0xff]
        %v292 = vld [vmem:[%s227 + $0xd8] sm:$0xff]
        %v293 = vld [vmem:[%s227 + $0xe0] sm:$0xff]
        %v294 = vld [vmem:[%s227 + $0xe8] sm:$0xff]
        %v295 = vld [vmem:[%s227 + $0xf0] sm:$0xff]
        %v296 = vld [vmem:[%s227 + $0xf8] sm:$0xff]
        %v297 = vld [vmem:[%s227 + $0x100] sm:$0xff]
        %v298 = vld [vmem:[%s227 + $0x108] sm:$0xff]
        %v299 = vld [vmem:[%s227 + $0x110] sm:$0xff]
        %v300 = vld [vmem:[%s227 + $0x118] sm:$0xff]
        %v301 = vld [vmem:[%s227 + $0x120] sm:$0xff]
        %v302 = vld [vmem:[%s227 + $0x128] sm:$0xff]
        %v303 = vld [vmem:[%s227 + $0x130] sm:$0xff]
        %v304 = vld [vmem:[%s227 + $0x138] sm:$0xff]
        %v305 = vld [vmem:[%s227 + $0x140] sm:$0xff]
        %v306 = vld [vmem:[%s227 + $0x148] sm:$0xff]
        %v307 = vld [vmem:[%s227 + $0x150] sm:$0xff]
        %v308 = vld [vmem:[%s227 + $0x158] sm:$0xff]
        %v309 = vld [vmem:[%s227 + $0x160] sm:$0xff]
        %v310 = vld [vmem:[%s227 + $0x168] sm:$0xff]
        %v311 = vld [vmem:[%s227 + $0x170] sm:$0xff]
        %v312 = vld [vmem:[%s227 + $0x178] sm:$0xff]
        %v313 = vld [vmem:[%s227 + $0x180] sm:$0xff]
        %v314 = vld [vmem:[%s227 + $0x188] sm:$0xff]
        %v315 = vld [vmem:[%s227 + $0x190] sm:$0xff]
        %v316 = vld [vmem:[%s227 + $0x198] sm:$0xff]
        %v317 = vld [vmem:[%s227 + $0x1a0] sm:$0xff]
        %v318 = vld [vmem:[%s227 + $0x1a8] sm:$0xff]
        %v319 = vld [vmem:[%s227 + $0x1b0] sm:$0xff]
        %v320 = vld [vmem:[%s227 + $0x1b8] sm:$0xff]
        %v321 = vld [vmem:[%s227 + $0x1c0] sm:$0xff]
        %v322 = vld [vmem:[%s227 + $0x1c8] sm:$0xff]
        %v323 = vld [vmem:[%s227 + $0x1d0] sm:$0xff]
        %v324 = vld [vmem:[%s227 + $0x1d8] sm:$0xff]
        %v325 = vld [vmem:[%s227 + $0x1e0] sm:$0xff]
        %v326 = vld [vmem:[%s227 + $0x1e8] sm:$0xff]
        %v327 = vld [vmem:[%s227 + $0x1f0] sm:$0xff]
        %v328 = vld [vmem:[%s227 + $0x1f8] sm:$0xff]
        %v329 = vld [vmem:[%s227 + $0x200] sm:$0xff]
        %v330 = vld [vmem:[%s227 + $0x208] sm:$0xff]
        %v331 = vld [vmem:[%s227 + $0x210] sm:$0xff]
        %v332 = vld [vmem:[%s227 + $0x218] sm:$0xff]
        %v333 = vld [vmem:[%s227 + $0x220] sm:$0xff]
        %v334 = vld [vmem:[%s227 + $0x228] sm:$0xff]
        %v335 = vld [vmem:[%s227 + $0x230] sm:$0xff]
        %v336 = vld [vmem:[%s227 + $0x238] sm:$0xff]
        %v337 = vld [vmem:[%s227 + $0x240] sm:$0xff]
        %v338 = vld [vmem:[%s227 + $0x248] sm:$0xff]
        %v339 = vld [vmem:[%s227 + $0x250] sm:$0xff]
        %v340 = vld [vmem:[%s227 + $0x258] sm:$0xff]
        %v341 = vpack.c.bf16 %v269, %v265
        %v342 = vpack.c.bf16 %v270, %v266
        %v343 = vpack.c.bf16 %v271, %v267
        %v344 = vpack.c.bf16 %v272, %v268
        %v345 = vpack.c.bf16 %v277, %v273
        %v346 = vpack.c.bf16 %v278, %v274
        %v347 = vpack.c.bf16 %v279, %v275
        %v348 = vpack.c.bf16 %v280, %v276
        %v349 = vpack.c.bf16 %v285, %v281
        %v350 = vpack.c.bf16 %v286, %v282
        %v351 = vpack.c.bf16 %v287, %v283
        %v352 = vpack.c.bf16 %v288, %v284
        %v353 = vpack.c.bf16 %v293, %v289
        %v354 = vpack.c.bf16 %v294, %v290
        %v355 = vpack.c.bf16 %v295, %v291
        %v356 = vpack.c.bf16 %v296, %v292
        %v357 = vpack.c.bf16 %v301, %v297
        %v358 = vpack.c.bf16 %v302, %v298
        %v359 = vpack.c.bf16 %v303, %v299
        %v360 = vpack.c.bf16 %v304, %v300
        %v361 = vpack.c.bf16 %v309, %v305
        %v362 = vpack.c.bf16 %v310, %v306
        %v363 = vpack.c.bf16 %v311, %v307
        %v364 = vpack.c.bf16 %v312, %v308
        %v365 = vpack.c.bf16 %v317, %v313
        %v366 = vpack.c.bf16 %v318, %v314
        %v367 = vpack.c.bf16 %v319, %v315
        %v368 = vpack.c.bf16 %v320, %v316
        %v369 = vpack.c.bf16 %v325, %v321
        %v370 = vpack.c.bf16 %v326, %v322
        %v371 = vpack.c.bf16 %v327, %v323
        %v372 = vpack.c.bf16 %v328, %v324
        %v373 = vpack.c.bf16 %v333, %v329
        %v374 = vpack.c.bf16 %v334, %v330
        %v375 = vpack.c.bf16 %v335, %v331
        %v376 = vpack.c.bf16 %v336, %v332
        %v377 = vpack.c.bf16 %v337, %v337
        %v378 = vpack.c.bf16 %v338, %v338
        %v379 = vpack.c.bf16 %v339, %v339
        %v380 = vpack.c.bf16 %v340, %v340
        %v381 = vld [vmem:[#allocation5] sm:$0xff]
        %v382 = vld [vmem:[#allocation5 + $0x8] sm:$0xff]
        %v383 = vld [vmem:[#allocation5 + $0x10] sm:$0xff]
        %v384 = vld [vmem:[#allocation5 + $0x18] sm:$0xff]
        %v385 = vld [vmem:[#allocation5 + $0x20] sm:$0xff]
        %v386 = vld [vmem:[#allocation5 + $0x28] sm:$0xff]
        %v387 = vld [vmem:[#allocation5 + $0x30] sm:$0xff]
        %v388 = vld [vmem:[#allocation5 + $0x38] sm:$0xff]
        %v389 = vld [vmem:[#allocation5 + $0x40] sm:$0xff]
        %v390 = vld [vmem:[#allocation5 + $0x48] sm:$0xff]
        %v391 = vld [vmem:[#allocation5 + $0x50] sm:$0xff]
        %v392 = vld [vmem:[#allocation5 + $0x58] sm:$0xff]
        %v393 = vld [vmem:[#allocation5 + $0x60] sm:$0xff]
        %v394 = vld [vmem:[#allocation5 + $0x68] sm:$0xff]
        %v395 = vld [vmem:[#allocation5 + $0x70] sm:$0xff]
        %v396 = vld [vmem:[#allocation5 + $0x78] sm:$0xff]
        %v397 = vld [vmem:[#allocation5 + $0x80] sm:$0xff]
        %v398 = vld [vmem:[#allocation5 + $0x88] sm:$0xff]
        %v399 = vld [vmem:[#allocation5 + $0x90] sm:$0xff]
        %v400 = vld [vmem:[#allocation5 + $0x98] sm:$0xff]
        %v401 = vld [vmem:[#allocation5 + $0xa0] sm:$0xff]
        %v402 = vld [vmem:[#allocation5 + $0xa8] sm:$0xff]
        %v403 = vld [vmem:[#allocation5 + $0xb0] sm:$0xff]
        %v404 = vld [vmem:[#allocation5 + $0xb8] sm:$0xff]
        %v405 = vld [vmem:[#allocation5 + $0xc0] sm:$0xff]
        %v406 = vld [vmem:[#allocation5 + $0xc8] sm:$0xff]
        %v407 = vld [vmem:[#allocation5 + $0xd0] sm:$0xff]
        %v408 = vld [vmem:[#allocation5 + $0xd8] sm:$0xff]
        %v409 = vld [vmem:[#allocation5 + $0xe0] sm:$0xff]
        %v410 = vld [vmem:[#allocation5 + $0xe8] sm:$0xff]
        %v411 = vld [vmem:[#allocation5 + $0xf0] sm:$0xff]
        %v412 = vld [vmem:[#allocation5 + $0xf8] sm:$0xff]
        %v413 = vld [vmem:[#allocation5 + $0x100] sm:$0xff]
        %v414 = vld [vmem:[#allocation5 + $0x108] sm:$0xff]
        %v415 = vld [vmem:[#allocation5 + $0x110] sm:$0xff]
        %v416 = vld [vmem:[#allocation5 + $0x118] sm:$0xff]
        %v417 = vld [vmem:[#allocation5 + $0x120] sm:$0xff]
        %v418 = vld [vmem:[#allocation5 + $0x128] sm:$0xff]
        %v419 = vld [vmem:[#allocation5 + $0x130] sm:$0xff]
        %v420 = vld [vmem:[#allocation5 + $0x138] sm:$0xff]
        %v421 = vld [vmem:[#allocation5 + $0x140] sm:$0xff]
        %v422 = vld [vmem:[#allocation5 + $0x148] sm:$0xff]
        %v423 = vld [vmem:[#allocation5 + $0x150] sm:$0xff]
        %v424 = vld [vmem:[#allocation5 + $0x158] sm:$0xff]
        %v425 = vld [vmem:[#allocation5 + $0x160] sm:$0xff]
        %v426 = vld [vmem:[#allocation5 + $0x168] sm:$0xff]
        %v427 = vld [vmem:[#allocation5 + $0x170] sm:$0xff]
        %v428 = vld [vmem:[#allocation5 + $0x178] sm:$0xff]
        %v429 = vld [vmem:[#allocation5 + $0x180] sm:$0xff]
        %v430 = vld [vmem:[#allocation5 + $0x188] sm:$0xff]
        %v431 = vld [vmem:[#allocation5 + $0x190] sm:$0xff]
        %v432 = vld [vmem:[#allocation5 + $0x198] sm:$0xff]
        %v433 = vld [vmem:[#allocation5 + $0x1a0] sm:$0xff]
        %v434 = vld [vmem:[#allocation5 + $0x1a8] sm:$0xff]
        %v435 = vld [vmem:[#allocation5 + $0x1b0] sm:$0xff]
        %v436 = vld [vmem:[#allocation5 + $0x1b8] sm:$0xff]
        %v437 = vld [vmem:[#allocation5 + $0x1c0] sm:$0xff]
        %v438 = vld [vmem:[#allocation5 + $0x1c8] sm:$0xff]
        %v439 = vld [vmem:[#allocation5 + $0x1d0] sm:$0xff]
        %v440 = vld [vmem:[#allocation5 + $0x1d8] sm:$0xff]
        %v441 = vld [vmem:[#allocation5 + $0x1e0] sm:$0xff]
        %v442 = vld [vmem:[#allocation5 + $0x1e8] sm:$0xff]
        %v443 = vld [vmem:[#allocation5 + $0x1f0] sm:$0xff]
        %v444 = vld [vmem:[#allocation5 + $0x1f8] sm:$0xff]
        %v445 = vld [vmem:[%s2] sm:$0x3]
        %v447 = vlaneseq
        %v448 = vshrl.u32 %v447, 7
        %v449 = vsub.s32 0, %v448
        %v450 = vrot.slane %v445, %v449
        %v451 = vlaneseq
        %v452 = vshrl.u32 %v451, 7
        %v453 = vsub.s32 1, %v452
        %v454 = vrot.slane %v445, %v453
        %v521 = vunpack.c.l.b16 %v381
        %v522 = vunpack.c.h.b16 %v381
        %v523 = vunpack.c.l.b16 %v382
        %v524 = vunpack.c.h.b16 %v382
        %v525 = vunpack.c.l.b16 %v383
        %v526 = vunpack.c.h.b16 %v383
        %v527 = vunpack.c.l.b16 %v384
        %v528 = vunpack.c.h.b16 %v384
        %v529 = vunpack.c.l.b16 %v385
        %v530 = vunpack.c.h.b16 %v385
        %v531 = vunpack.c.l.b16 %v386
        %v532 = vunpack.c.h.b16 %v386
        %v533 = vunpack.c.l.b16 %v387
        %v534 = vunpack.c.h.b16 %v387
        %v535 = vunpack.c.l.b16 %v388
        %v536 = vunpack.c.h.b16 %v388
        %v537 = vunpack.c.l.b16 %v389
        %v538 = vunpack.c.h.b16 %v389
        %v539 = vunpack.c.l.b16 %v390
        %v540 = vunpack.c.h.b16 %v390
        %v541 = vunpack.c.l.b16 %v391
        %v542 = vunpack.c.h.b16 %v391
        %v543 = vunpack.c.l.b16 %v392
        %v544 = vunpack.c.h.b16 %v392
        %v545 = vunpack.c.l.b16 %v393
        %v546 = vunpack.c.h.b16 %v393
        %v547 = vunpack.c.l.b16 %v394
        %v548 = vunpack.c.h.b16 %v394
        %v549 = vunpack.c.l.b16 %v395
        %v550 = vunpack.c.h.b16 %v395
        %v551 = vunpack.c.l.b16 %v396
        %v552 = vunpack.c.h.b16 %v396
        %v553 = vunpack.c.l.b16 %v397
        %v554 = vunpack.c.h.b16 %v397
        %v555 = vunpack.c.l.b16 %v398
        %v556 = vunpack.c.h.b16 %v398
        %v557 = vunpack.c.l.b16 %v399
        %v558 = vunpack.c.h.b16 %v399
        %v559 = vunpack.c.l.b16 %v400
        %v560 = vunpack.c.h.b16 %v400
        %v561 = vunpack.c.l.b16 %v401
        %v562 = vunpack.c.h.b16 %v401
        %v563 = vunpack.c.l.b16 %v402
        %v564 = vunpack.c.h.b16 %v402
        %v565 = vunpack.c.l.b16 %v403
        %v566 = vunpack.c.h.b16 %v403
        %v567 = vunpack.c.l.b16 %v404
        %v568 = vunpack.c.h.b16 %v404
        %v569 = vunpack.c.l.b16 %v405
        %v570 = vunpack.c.h.b16 %v405
        %v571 = vunpack.c.l.b16 %v406
        %v572 = vunpack.c.h.b16 %v406
        %v573 = vunpack.c.l.b16 %v407
        %v574 = vunpack.c.h.b16 %v407
        %v575 = vunpack.c.l.b16 %v408
        %v576 = vunpack.c.h.b16 %v408
        %v577 = vunpack.c.l.b16 %v409
        %v578 = vunpack.c.h.b16 %v409
        %v579 = vunpack.c.l.b16 %v410
        %v580 = vunpack.c.h.b16 %v410
        %v581 = vunpack.c.l.b16 %v411
        %v582 = vunpack.c.h.b16 %v411
        %v583 = vunpack.c.l.b16 %v412
        %v584 = vunpack.c.h.b16 %v412
        %v585 = vunpack.c.l.b16 %v413
        %v586 = vunpack.c.h.b16 %v413
        %v587 = vunpack.c.l.b16 %v414
        %v588 = vunpack.c.h.b16 %v414
        %v589 = vunpack.c.l.b16 %v415
        %v590 = vunpack.c.h.b16 %v415
        %v591 = vunpack.c.l.b16 %v416
        %v592 = vunpack.c.h.b16 %v416
        %v593 = vunpack.c.l.b16 %v417
        %v594 = vunpack.c.h.b16 %v417
        %v595 = vunpack.c.l.b16 %v418
        %v596 = vunpack.c.h.b16 %v418
        %v597 = vunpack.c.l.b16 %v419
        %v598 = vunpack.c.h.b16 %v419
        %v599 = vunpack.c.l.b16 %v420
        %v600 = vunpack.c.h.b16 %v420
        %v601 = vunpack.c.l.b16 %v421
        %v602 = vunpack.c.h.b16 %v421
        %v603 = vunpack.c.l.b16 %v422
        %v604 = vunpack.c.h.b16 %v422
        %v605 = vunpack.c.l.b16 %v423
        %v606 = vunpack.c.h.b16 %v423
        %v607 = vunpack.c.l.b16 %v424
        %v608 = vunpack.c.h.b16 %v424
        %v609 = vunpack.c.l.b16 %v425
        %v610 = vunpack.c.h.b16 %v425
        %v611 = vunpack.c.l.b16 %v426
        %v612 = vunpack.c.h.b16 %v426
        %v613 = vunpack.c.l.b16 %v427
        %v614 = vunpack.c.h.b16 %v427
        %v615 = vunpack.c.l.b16 %v428
        %v616 = vunpack.c.h.b16 %v428
        %v617 = vunpack.c.l.b16 %v429
        %v618 = vunpack.c.h.b16 %v429
        %v619 = vunpack.c.l.b16 %v430
        %v620 = vunpack.c.h.b16 %v430
        %v621 = vunpack.c.l.b16 %v431
        %v622 = vunpack.c.h.b16 %v431
        %v623 = vunpack.c.l.b16 %v432
        %v624 = vunpack.c.h.b16 %v432
        %v625 = vunpack.c.l.b16 %v433
        %v626 = vunpack.c.h.b16 %v433
        %v627 = vunpack.c.l.b16 %v434
        %v628 = vunpack.c.h.b16 %v434
        %v629 = vunpack.c.l.b16 %v435
        %v630 = vunpack.c.h.b16 %v435
        %v631 = vunpack.c.l.b16 %v436
        %v632 = vunpack.c.h.b16 %v436
        %v633 = vunpack.c.l.b16 %v437
        %v634 = vunpack.c.h.b16 %v437
        %v635 = vunpack.c.l.b16 %v438
        %v636 = vunpack.c.h.b16 %v438
        %v637 = vunpack.c.l.b16 %v439
        %v638 = vunpack.c.h.b16 %v439
        %v639 = vunpack.c.l.b16 %v440
        %v640 = vunpack.c.h.b16 %v440
        %v641 = vunpack.c.l.b16 %v441
        %v642 = vunpack.c.h.b16 %v441
        %v643 = vunpack.c.l.b16 %v442
        %v644 = vunpack.c.h.b16 %v442
        %v645 = vunpack.c.l.b16 %v443
        %v646 = vunpack.c.h.b16 %v443
        %v647 = vunpack.c.l.b16 %v444
        %v648 = vunpack.c.h.b16 %v444
        %v649 = vpack.c.b16 %v523, %v521
        %v650 = vpack.c.b16 %v524, %v522
        %v651 = vpack.c.b16 %v527, %v525
        %v652 = vpack.c.b16 %v528, %v526
        %v653 = vpack.c.b16 %v531, %v529
        %v654 = vpack.c.b16 %v532, %v530
        %v655 = vpack.c.b16 %v535, %v533
        %v656 = vpack.c.b16 %v536, %v534
        %v657 = vpack.c.b16 %v539, %v537
        %v658 = vpack.c.b16 %v540, %v538
        %v659 = vpack.c.b16 %v543, %v541
        %v660 = vpack.c.b16 %v544, %v542
        %v661 = vpack.c.b16 %v547, %v545
        %v662 = vpack.c.b16 %v548, %v546
        %v663 = vpack.c.b16 %v551, %v549
        %v664 = vpack.c.b16 %v552, %v550
        %v665 = vpack.c.b16 %v555, %v553
        %v666 = vpack.c.b16 %v556, %v554
        %v667 = vpack.c.b16 %v559, %v557
        %v668 = vpack.c.b16 %v560, %v558
        %v669 = vpack.c.b16 %v563, %v561
        %v670 = vpack.c.b16 %v564, %v562
        %v671 = vpack.c.b16 %v567, %v565
        %v672 = vpack.c.b16 %v568, %v566
        %v673 = vpack.c.b16 %v571, %v569
        %v674 = vpack.c.b16 %v572, %v570
        %v675 = vpack.c.b16 %v575, %v573
        %v676 = vpack.c.b16 %v576, %v574
        %v677 = vpack.c.b16 %v579, %v577
        %v678 = vpack.c.b16 %v580, %v578
        %v679 = vpack.c.b16 %v583, %v581
        %v680 = vpack.c.b16 %v584, %v582
        %v681 = vpack.c.b16 %v587, %v585
        %v682 = vpack.c.b16 %v588, %v586
        %v683 = vpack.c.b16 %v591, %v589
        %v684 = vpack.c.b16 %v592, %v590
        %v685 = vpack.c.b16 %v595, %v593
        %v686 = vpack.c.b16 %v596, %v594
        %v687 = vpack.c.b16 %v599, %v597
        %v688 = vpack.c.b16 %v600, %v598
        %v689 = vpack.c.b16 %v603, %v601
        %v690 = vpack.c.b16 %v604, %v602
        %v691 = vpack.c.b16 %v607, %v605
        %v692 = vpack.c.b16 %v608, %v606
        %v693 = vpack.c.b16 %v611, %v609
        %v694 = vpack.c.b16 %v612, %v610
        %v695 = vpack.c.b16 %v615, %v613
        %v696 = vpack.c.b16 %v616, %v614
        %v697 = vpack.c.b16 %v619, %v617
        %v698 = vpack.c.b16 %v620, %v618
        %v699 = vpack.c.b16 %v623, %v621
        %v700 = vpack.c.b16 %v624, %v622
        %v701 = vpack.c.b16 %v627, %v625
        %v702 = vpack.c.b16 %v628, %v626
        %v703 = vpack.c.b16 %v631, %v629
        %v704 = vpack.c.b16 %v632, %v630
        %v705 = vpack.c.b16 %v635, %v633
        %v706 = vpack.c.b16 %v636, %v634
        %v707 = vpack.c.b16 %v639, %v637
        %v708 = vpack.c.b16 %v640, %v638
        %v709 = vpack.c.b16 %v643, %v641
        %v710 = vpack.c.b16 %v644, %v642
        %v711 = vpack.c.b16 %v647, %v645
        %v712 = vpack.c.b16 %v648, %v646
        %777 = vmatprep.subr.bf16.mxu0 %v650
        %778 = vmatpush1.bf16.msra.mxu0 %v649
        %779 = vmatprep.subr.bf16.mxu0 %v652
        %780 = vmatpush1.bf16.msra.mxu0 %v651
        %781 = vmatprep.subr.bf16.mxu0 %v654
        %782 = vmatpush1.bf16.msra.mxu0 %v653
        %783 = vmatprep.subr.bf16.mxu0 %v656
        %784 = vmatpush1.bf16.msra.mxu0 %v655
        %785 = vmatprep.subr.bf16.mxu0 %v658
        %786 = vmatpush1.bf16.msra.mxu0 %v657
        %787 = vmatprep.subr.bf16.mxu0 %v660
        %788 = vmatpush1.bf16.msra.mxu0 %v659
        %789 = vmatprep.subr.bf16.mxu0 %v662
        %790 = vmatpush1.bf16.msra.mxu0 %v661
        %791 = vmatprep.subr.bf16.mxu0 %v664
        %792 = vmatpush1.bf16.msra.mxu0 %v663
        %793 = vmatprep.subr.bf16.mxu0 %v666
        %794 = vmatpush1.bf16.msra.mxu0 %v665
        %795 = vmatprep.subr.bf16.mxu0 %v668
        %796 = vmatpush1.bf16.msra.mxu0 %v667
        %797 = vmatprep.subr.bf16.mxu0 %v670
        %798 = vmatpush1.bf16.msra.mxu0 %v669
        %799 = vmatprep.subr.bf16.mxu0 %v672
        %800 = vmatpush1.bf16.msra.mxu0 %v671
        %801 = vmatprep.subr.bf16.mxu0 %v674
        %802 = vmatpush1.bf16.msra.mxu0 %v673
        %803 = vmatprep.subr.bf16.mxu0 %v676
        %804 = vmatpush1.bf16.msra.mxu0 %v675
        %805 = vmatprep.subr.bf16.mxu0 %v678
        %806 = vmatpush1.bf16.msra.mxu0 %v677
        %807 = vmatprep.subr.bf16.mxu0 %v680
        %808 = vmatpush1.bf16.msra.mxu0 %v679
        %809 = vmatprep.mubr.bf16.mxu0 %v342
        %810 = vmatmul.mubr.bf16.gmra.mrb[0].mxu0 %v341
        %v811 = vpop.f32.mrb[0].mxu0
        %v812 = vadd.f32 %v450, %v811
        %v813 = vpop.f32.mrb[0].mxu0
        %v814 = vadd.f32 %v454, %v813
        %v815 = vpop.f32.mrb[0].mxu0
        %v816 = vadd.f32 %v450, %v815
        %v817 = vpop.f32.mrb[0].mxu0
        %v818 = vadd.f32 %v454, %v817
        %819 = vmatprep.mubr.bf16.mxu0 %v346
        %820 = vmatmul.mubr.bf16.gmra.mrb[0].mxu0 %v345
        %v821 = vpop.f32.mrb[0].mxu0
        %v822 = vadd.f32 %v450, %v821
        %v823 = vpop.f32.mrb[0].mxu0
        %v824 = vadd.f32 %v454, %v823
        %v825 = vpop.f32.mrb[0].mxu0
        %v826 = vadd.f32 %v450, %v825
        %v827 = vpop.f32.mrb[0].mxu0
        %v828 = vadd.f32 %v454, %v827
        %829 = vmatprep.mubr.bf16.mxu0 %v350
        %830 = vmatmul.mubr.bf16.gmra.mrb[0].mxu0 %v349
        %v831 = vpop.f32.mrb[0].mxu0
        %v832 = vadd.f32 %v450, %v831
        %v833 = vpop.f32.mrb[0].mxu0
        %v834 = vadd.f32 %v454, %v833
        %v835 = vpop.f32.mrb[0].mxu0
        %v836 = vadd.f32 %v450, %v835
        %v837 = vpop.f32.mrb[0].mxu0
        %v838 = vadd.f32 %v454, %v837
        %839 = vmatprep.mubr.bf16.mxu0 %v354
        %840 = vmatmul.mubr.bf16.gmra.mrb[0].mxu0 %v353
        %v841 = vpop.f32.mrb[0].mxu0
        %v842 = vadd.f32 %v450, %v841
        %v843 = vpop.f32.mrb[0].mxu0
        %v844 = vadd.f32 %v454, %v843
        %v845 = vpop.f32.mrb[0].mxu0
        %v846 = vadd.f32 %v450, %v845
        %v847 = vpop.f32.mrb[0].mxu0
        %v848 = vadd.f32 %v454, %v847
        %849 = vmatprep.mubr.bf16.mxu0 %v358
        %850 = vmatmul.mubr.bf16.gmra.mrb[0].mxu0 %v357
        %v851 = vpop.f32.mrb[0].mxu0
        %v852 = vadd.f32 %v450, %v851
        %v853 = vpop.f32.mrb[0].mxu0
        %v854 = vadd.f32 %v454, %v853
        %v855 = vpop.f32.mrb[0].mxu0
        %v856 = vadd.f32 %v450, %v855
        %v857 = vpop.f32.mrb[0].mxu0
        %v858 = vadd.f32 %v454, %v857
        %859 = vmatprep.mubr.bf16.mxu0 %v362
        %860 = vmatmul.mubr.bf16.gmra.mrb[0].mxu0 %v361
        %v861 = vpop.f32.mrb[0].mxu0
        %v862 = vadd.f32 %v450, %v861
        %v863 = vpop.f32.mrb[0].mxu0
        %v864 = vadd.f32 %v454, %v863
        %v865 = vpop.f32.mrb[0].mxu0
        %v866 = vadd.f32 %v450, %v865
        %v867 = vpop.f32.mrb[0].mxu0
        %v868 = vadd.f32 %v454, %v867
        %869 = vmatprep.mubr.bf16.mxu0 %v366
        %870 = vmatmul.mubr.bf16.gmra.mrb[0].mxu0 %v365
        %v871 = vpop.f32.mrb[0].mxu0
        %v872 = vadd.f32 %v450, %v871
        %v873 = vpop.f32.mrb[0].mxu0
        %v874 = vadd.f32 %v454, %v873
        %v875 = vpop.f32.mrb[0].mxu0
        %v876 = vadd.f32 %v450, %v875
        %v877 = vpop.f32.mrb[0].mxu0
        %v878 = vadd.f32 %v454, %v877
        %879 = vmatprep.mubr.bf16.mxu0 %v370
        %880 = vmatmul.mubr.bf16.gmra.mrb[0].mxu0 %v369
        %v881 = vpop.f32.mrb[0].mxu0
        %v882 = vadd.f32 %v450, %v881
        %v883 = vpop.f32.mrb[0].mxu0
        %v884 = vadd.f32 %v454, %v883
        %v885 = vpop.f32.mrb[0].mxu0
        %v886 = vadd.f32 %v450, %v885
        %v887 = vpop.f32.mrb[0].mxu0
        %v888 = vadd.f32 %v454, %v887
        %889 = vmatprep.mubr.bf16.mxu0 %v374
        %890 = vmatmul.mubr.bf16.gmra.mrb[0].mxu0 %v373
        %v891 = vpop.f32.mrb[0].mxu0
        %v892 = vadd.f32 %v450, %v891
        %v893 = vpop.f32.mrb[0].mxu0
        %v894 = vadd.f32 %v454, %v893
        %v895 = vpop.f32.mrb[0].mxu0
        %v896 = vadd.f32 %v450, %v895
        %v897 = vpop.f32.mrb[0].mxu0
        %v898 = vadd.f32 %v454, %v897
        %899 = vmatprep.mubr.bf16.mxu0 %v378
        %900 = vmatmul.mubr.bf16.gmra.mrb[0].mxu0 %v377
        %v901 = vpop.f32.mrb[0].mxu0
        %v902 = vadd.f32 %v450, %v901
        %v903 = vpop.f32.mrb[0].mxu0
        %v904 = vadd.f32 %v454, %v903
        %v905 = vpop.f32.mrb[0].mxu0
        %v906 = vpop.f32.mrb[0].mxu0
        %907 = vdwg.mxu0
        %908 = vmatprep.subr.bf16.mxu0 %v682
        %909 = vmatpush1.bf16.msra.mxu0 %v681
        %910 = vmatprep.subr.bf16.mxu0 %v684
        %911 = vmatpush1.bf16.msra.mxu0 %v683
        %912 = vmatprep.subr.bf16.mxu0 %v686
        %913 = vmatpush1.bf16.msra.mxu0 %v685
        %914 = vmatprep.subr.bf16.mxu0 %v688
        %915 = vmatpush1.bf16.msra.mxu0 %v687
        %916 = vmatprep.subr.bf16.mxu0 %v690
        %917 = vmatpush1.bf16.msra.mxu0 %v689
        %918 = vmatprep.subr.bf16.mxu0 %v692
        %919 = vmatpush1.bf16.msra.mxu0 %v691
        %920 = vmatprep.subr.bf16.mxu0 %v694
        %921 = vmatpush1.bf16.msra.mxu0 %v693
        %922 = vmatprep.subr.bf16.mxu0 %v696
        %923 = vmatpush1.bf16.msra.mxu0 %v695
        %924 = vmatprep.subr.bf16.mxu0 %v698
        %925 = vmatpush1.bf16.msra.mxu0 %v697
        %926 = vmatprep.subr.bf16.mxu0 %v700
        %927 = vmatpush1.bf16.msra.mxu0 %v699
        %928 = vmatprep.subr.bf16.mxu0 %v702
        %929 = vmatpush1.bf16.msra.mxu0 %v701
        %930 = vmatprep.subr.bf16.mxu0 %v704
        %931 = vmatpush1.bf16.msra.mxu0 %v703
        %932 = vmatprep.subr.bf16.mxu0 %v706
        %933 = vmatpush1.bf16.msra.mxu0 %v705
        %934 = vmatprep.subr.bf16.mxu0 %v708
        %935 = vmatpush1.bf16.msra.mxu0 %v707
        %936 = vmatprep.subr.bf16.mxu0 %v710
        %937 = vmatpush1.bf16.msra.mxu0 %v709
        %938 = vmatprep.subr.bf16.mxu0 %v712
        %939 = vmatpush1.bf16.msra.mxu0 %v711
        %940 = vmatprep.mubr.bf16.mxu0 %v344
        %941 = vmatmul.mubr.bf16.gmra.mrb[0].mxu0 %v343
        %v942 = vpop.f32.mrb[0].mxu0
        %v943 = vadd.f32 %v812, %v942
        %v944 = vpop.f32.mrb[0].mxu0
        %v945 = vadd.f32 %v814, %v944
        %v946 = vpop.f32.mrb[0].mxu0
        %v947 = vadd.f32 %v816, %v946
        %v948 = vpop.f32.mrb[0].mxu0
        %v949 = vadd.f32 %v818, %v948
        %950 = vmatprep.mubr.bf16.mxu0 %v348
        %951 = vmatmul.mubr.bf16.gmra.mrb[0].mxu0 %v347
        %v952 = vpop.f32.mrb[0].mxu0
        %v953 = vadd.f32 %v822, %v952
        %v954 = vpop.f32.mrb[0].mxu0
        %v955 = vadd.f32 %v824, %v954
        %v956 = vpop.f32.mrb[0].mxu0
        %v957 = vadd.f32 %v826, %v956
        %v958 = vpop.f32.mrb[0].mxu0
        %v959 = vadd.f32 %v828, %v958
        %960 = vmatprep.mubr.bf16.mxu0 %v352
        %961 = vmatmul.mubr.bf16.gmra.mrb[0].mxu0 %v351
        %v962 = vpop.f32.mrb[0].mxu0
        %v963 = vadd.f32 %v832, %v962
        %v964 = vpop.f32.mrb[0].mxu0
        %v965 = vadd.f32 %v834, %v964
        %v966 = vpop.f32.mrb[0].mxu0
        %v967 = vadd.f32 %v836, %v966
        %v968 = vpop.f32.mrb[0].mxu0
        %v969 = vadd.f32 %v838, %v968
        %970 = vmatprep.mubr.bf16.mxu0 %v356
        %971 = vmatmul.mubr.bf16.gmra.mrb[0].mxu0 %v355
        %v972 = vpop.f32.mrb[0].mxu0
        %v973 = vadd.f32 %v842, %v972
        %v974 = vpop.f32.mrb[0].mxu0
        %v975 = vadd.f32 %v844, %v974
        %v976 = vpop.f32.mrb[0].mxu0
        %v977 = vadd.f32 %v846, %v976
        %v978 = vpop.f32.mrb[0].mxu0
        %v979 = vadd.f32 %v848, %v978
        %980 = vmatprep.mubr.bf16.mxu0 %v360
        %981 = vmatmul.mubr.bf16.gmra.mrb[0].mxu0 %v359
        %v982 = vpop.f32.mrb[0].mxu0
        %v983 = vadd.f32 %v852, %v982
        %v984 = vpop.f32.mrb[0].mxu0
        %v985 = vadd.f32 %v854, %v984
        %v986 = vpop.f32.mrb[0].mxu0
        %v987 = vadd.f32 %v856, %v986
        %v988 = vpop.f32.mrb[0].mxu0
        %v989 = vadd.f32 %v858, %v988
        %990 = vmatprep.mubr.bf16.mxu0 %v364
        %991 = vmatmul.mubr.bf16.gmra.mrb[0].mxu0 %v363
        %v992 = vpop.f32.mrb[0].mxu0
        %v993 = vadd.f32 %v862, %v992
        %v994 = vpop.f32.mrb[0].mxu0
        %v995 = vadd.f32 %v864, %v994
        %v996 = vpop.f32.mrb[0].mxu0
        %v997 = vadd.f32 %v866, %v996
        %v998 = vpop.f32.mrb[0].mxu0
        %v999 = vadd.f32 %v868, %v998
        %1000 = vmatprep.mubr.bf16.mxu0 %v368
        %1001 = vmatmul.mubr.bf16.gmra.mrb[0].mxu0 %v367
        %v1002 = vpop.f32.mrb[0].mxu0
        %v1003 = vadd.f32 %v872, %v1002
        %v1004 = vpop.f32.mrb[0].mxu0
        %v1005 = vadd.f32 %v874, %v1004
        %v1006 = vpop.f32.mrb[0].mxu0
        %v1007 = vadd.f32 %v876, %v1006
        %v1008 = vpop.f32.mrb[0].mxu0
        %v1009 = vadd.f32 %v878, %v1008
        %1010 = vmatprep.mubr.bf16.mxu0 %v372
        %1011 = vmatmul.mubr.bf16.gmra.mrb[0].mxu0 %v371
        %v1012 = vpop.f32.mrb[0].mxu0
        %v1013 = vadd.f32 %v882, %v1012
        %v1014 = vpop.f32.mrb[0].mxu0
        %v1015 = vadd.f32 %v884, %v1014
        %v1016 = vpop.f32.mrb[0].mxu0
        %v1017 = vadd.f32 %v886, %v1016
        %v1018 = vpop.f32.mrb[0].mxu0
        %v1019 = vadd.f32 %v888, %v1018
        %1020 = vmatprep.mubr.bf16.mxu0 %v376
        %1021 = vmatmul.mubr.bf16.gmra.mrb[0].mxu0 %v375
        %v1022 = vpop.f32.mrb[0].mxu0
        %v1023 = vadd.f32 %v892, %v1022
        %v1024 = vpop.f32.mrb[0].mxu0
        %v1025 = vadd.f32 %v894, %v1024
        %v1026 = vpop.f32.mrb[0].mxu0
        %v1027 = vadd.f32 %v896, %v1026
        %v1028 = vpop.f32.mrb[0].mxu0
        %v1029 = vadd.f32 %v898, %v1028
        %1030 = vmatprep.mubr.bf16.mxu0 %v380
        %1031 = vmatmul.mubr.bf16.gmra.mrb[0].mxu0 %v379
        %v1032 = vpop.f32.mrb[0].mxu0
        %v1033 = vadd.f32 %v902, %v1032
        %v1034 = vpop.f32.mrb[0].mxu0
        %v1035 = vadd.f32 %v904, %v1034
        %v1036 = vpop.f32.mrb[0].mxu0
        %v1037 = vpop.f32.mrb[0].mxu0
        %1038 = vdwg.mxu0
        %v1039 = vtanh.pop %v943
        %v1040 = vtanh.pop %v947
        %v1041 = vtanh.pop %v953
        %v1042 = vtanh.pop %v957
        %v1043 = vtanh.pop %v963
        %v1044 = vtanh.pop %v967
        %v1045 = vtanh.pop %v973
        %v1046 = vtanh.pop %v977
        %v1047 = vtanh.pop %v983
        %v1048 = vtanh.pop %v987
        %v1049 = vtanh.pop %v993
        %v1050 = vtanh.pop %v997
        %v1051 = vtanh.pop %v1003
        %v1052 = vtanh.pop %v1007
        %v1053 = vtanh.pop %v1013
        %v1054 = vtanh.pop %v1017
        %v1055 = vtanh.pop %v1023
        %v1056 = vtanh.pop %v1027
        %v1057 = vtanh.pop %v1033
        %v1058 = vxor.u32 %v945, 2147483648
        %v1059 = vxor.u32 %v949, 2147483648
        %v1060 = vxor.u32 %v955, 2147483648
        %v1061 = vxor.u32 %v959, 2147483648
        %v1062 = vxor.u32 %v965, 2147483648
        %v1063 = vxor.u32 %v969, 2147483648
        %v1064 = vxor.u32 %v975, 2147483648
        %v1065 = vxor.u32 %v979, 2147483648
        %v1066 = vxor.u32 %v985, 2147483648
        %v1067 = vxor.u32 %v989, 2147483648
        %v1068 = vxor.u32 %v995, 2147483648
        %v1069 = vxor.u32 %v999, 2147483648
        %v1070 = vxor.u32 %v1005, 2147483648
        %v1071 = vxor.u32 %v1009, 2147483648
        %v1072 = vxor.u32 %v1015, 2147483648
        %v1073 = vxor.u32 %v1019, 2147483648
        %v1074 = vxor.u32 %v1025, 2147483648
        %v1075 = vxor.u32 %v1029, 2147483648
        %v1076 = vxor.u32 %v1035, 2147483648
        %v1077 = vmul.f32 %v1058, 1.442695
        %v1078 = vpow.pop %v1077
        %v1079 = vmul.f32 %v1059, 1.442695
        %v1080 = vpow.pop %v1079
        %v1081 = vmul.f32 %v1060, 1.442695
        %v1082 = vpow.pop %v1081
        %v1083 = vmul.f32 %v1061, 1.442695
        %v1084 = vpow.pop %v1083
        %v1085 = vmul.f32 %v1062, 1.442695
        %v1086 = vpow.pop %v1085
        %v1087 = vmul.f32 %v1063, 1.442695
        %v1088 = vpow.pop %v1087
        %v1089 = vmul.f32 %v1064, 1.442695
        %v1090 = vpow.pop %v1089
        %v1091 = vmul.f32 %v1065, 1.442695
        %v1092 = vpow.pop %v1091
        %v1093 = vmul.f32 %v1066, 1.442695
        %v1094 = vpow.pop %v1093
        %v1095 = vmul.f32 %v1067, 1.442695
        %v1096 = vpow.pop %v1095
        %v1097 = vmul.f32 %v1068, 1.442695
        %v1098 = vpow.pop %v1097
        %v1099 = vmul.f32 %v1069, 1.442695
        %v1100 = vpow.pop %v1099
        %v1101 = vmul.f32 %v1070, 1.442695
        %v1102 = vpow.pop %v1101
        %v1103 = vmul.f32 %v1071, 1.442695
        %v1104 = vpow.pop %v1103
        %v1105 = vmul.f32 %v1072, 1.442695
        %v1106 = vpow.pop %v1105
        %v1107 = vmul.f32 %v1073, 1.442695
        %v1108 = vpow.pop %v1107
        %v1109 = vmul.f32 %v1074, 1.442695
        %v1110 = vpow.pop %v1109
        %v1111 = vmul.f32 %v1075, 1.442695
        %v1112 = vpow.pop %v1111
        %v1113 = vmul.f32 %v1076, 1.442695
        %v1114 = vpow.pop %v1113
        %v1115 = vadd.f32 %v1078, 1.0
        %v1116 = vadd.f32 %v1080, 1.0
        %v1117 = vadd.f32 %v1082, 1.0
        %v1118 = vadd.f32 %v1084, 1.0
        %v1119 = vadd.f32 %v1086, 1.0
        %v1120 = vadd.f32 %v1088, 1.0
        %v1121 = vadd.f32 %v1090, 1.0
        %v1122 = vadd.f32 %v1092, 1.0
        %v1123 = vadd.f32 %v1094, 1.0
        %v1124 = vadd.f32 %v1096, 1.0
        %v1125 = vadd.f32 %v1098, 1.0
        %v1126 = vadd.f32 %v1100, 1.0
        %v1127 = vadd.f32 %v1102, 1.0
        %v1128 = vadd.f32 %v1104, 1.0
        %v1129 = vadd.f32 %v1106, 1.0
        %v1130 = vadd.f32 %v1108, 1.0
        %v1131 = vadd.f32 %v1110, 1.0
        %v1132 = vadd.f32 %v1112, 1.0
        %v1133 = vadd.f32 %v1114, 1.0
        %v1134 = vrcp.pop %v1115
        %v1135 = vmul.f32 1.0, %v1134
        %v1136 = vrcp.pop %v1116
        %v1137 = vmul.f32 1.0, %v1136
        %v1138 = vrcp.pop %v1117
        %v1139 = vmul.f32 1.0, %v1138
        %v1140 = vrcp.pop %v1118
        %v1141 = vmul.f32 1.0, %v1140
        %v1142 = vrcp.pop %v1119
        %v1143 = vmul.f32 1.0, %v1142
        %v1144 = vrcp.pop %v1120
        %v1145 = vmul.f32 1.0, %v1144
        %v1146 = vrcp.pop %v1121
        %v1147 = vmul.f32 1.0, %v1146
        %v1148 = vrcp.pop %v1122
        %v1149 = vmul.f32 1.0, %v1148
        %v1150 = vrcp.pop %v1123
        %v1151 = vmul.f32 1.0, %v1150
        %v1152 = vrcp.pop %v1124
        %v1153 = vmul.f32 1.0, %v1152
        %v1154 = vrcp.pop %v1125
        %v1155 = vmul.f32 1.0, %v1154
        %v1156 = vrcp.pop %v1126
        %v1157 = vmul.f32 1.0, %v1156
        %v1158 = vrcp.pop %v1127
        %v1159 = vmul.f32 1.0, %v1158
        %v1160 = vrcp.pop %v1128
        %v1161 = vmul.f32 1.0, %v1160
        %v1162 = vrcp.pop %v1129
        %v1163 = vmul.f32 1.0, %v1162
        %v1164 = vrcp.pop %v1130
        %v1165 = vmul.f32 1.0, %v1164
        %v1166 = vrcp.pop %v1131
        %v1167 = vmul.f32 1.0, %v1166
        %v1168 = vrcp.pop %v1132
        %v1169 = vmul.f32 1.0, %v1168
        %v1170 = vrcp.pop %v1133
        %v1171 = vmul.f32 1.0, %v1170
        %v1172 = vmul.f32 %v1039, %v1135
        %v1173 = vmul.f32 %v1040, %v1137
        %v1174 = vmul.f32 %v1041, %v1139
        %v1175 = vmul.f32 %v1042, %v1141
        %v1176 = vmul.f32 %v1043, %v1143
        %v1177 = vmul.f32 %v1044, %v1145
        %v1178 = vmul.f32 %v1045, %v1147
        %v1179 = vmul.f32 %v1046, %v1149
        %v1180 = vmul.f32 %v1047, %v1151
        %v1181 = vmul.f32 %v1048, %v1153
        %v1182 = vmul.f32 %v1049, %v1155
        %v1183 = vmul.f32 %v1050, %v1157
        %v1184 = vmul.f32 %v1051, %v1159
        %v1185 = vmul.f32 %v1052, %v1161
        %v1186 = vmul.f32 %v1053, %v1163
        %v1187 = vmul.f32 %v1054, %v1165
        %v1188 = vmul.f32 %v1055, %v1167
        %v1189 = vmul.f32 %v1056, %v1169
        %v1190 = vmul.f32 %v1057, %v1171
        %v1191 = vld [vmem:[%s3] sm:$0x1]
        %v1193 = vlaneseq
        %v1194 = vshrl.u32 %v1193, 7
        %v1195 = vsub.s32 0, %v1194
        %v1196 = vrot.slane %v1191, %v1195
        %v1198 = vmul.f32 %v1172, %v1196
        %v1199 = vmul.f32 %v1173, %v1196
        %v1200 = vmul.f32 %v1174, %v1196
        %v1201 = vmul.f32 %v1175, %v1196
        %v1202 = vmul.f32 %v1176, %v1196
        %v1203 = vmul.f32 %v1177, %v1196
        %v1204 = vmul.f32 %v1178, %v1196
        %v1205 = vmul.f32 %v1179, %v1196
        %v1206 = vmul.f32 %v1180, %v1196
        %v1207 = vmul.f32 %v1181, %v1196
        %v1208 = vmul.f32 %v1182, %v1196
        %v1209 = vmul.f32 %v1183, %v1196
        %v1210 = vmul.f32 %v1184, %v1196
        %v1211 = vmul.f32 %v1185, %v1196
        %v1212 = vmul.f32 %v1186, %v1196
        %v1213 = vmul.f32 %v1187, %v1196
        %v1214 = vmul.f32 %v1188, %v1196
        %v1215 = vmul.f32 %v1189, %v1196
        %v1216 = vmul.f32 %v1190, %v1196
        %1217 = vadd.xlane.f32.xlu0 %v1198
        %v1218 = vpop.xlane.xlu0 %1217
        %1219 = vadd.xlane.f32.xlu0 %v1199
        %v1220 = vpop.xlane.xlu0 %1219
        %1221 = vadd.xlane.f32.xlu0 %v1200
        %v1222 = vpop.xlane.xlu0 %1221
        %1223 = vadd.xlane.f32.xlu0 %v1201
        %v1224 = vpop.xlane.xlu0 %1223
        %1225 = vadd.xlane.f32.xlu0 %v1202
        %v1226 = vpop.xlane.xlu0 %1225
        %1227 = vadd.xlane.f32.xlu0 %v1203
        %v1228 = vpop.xlane.xlu0 %1227
        %1229 = vadd.xlane.f32.xlu0 %v1204
        %v1230 = vpop.xlane.xlu0 %1229
        %1231 = vadd.xlane.f32.xlu0 %v1205
        %v1232 = vpop.xlane.xlu0 %1231
        %1233 = vadd.xlane.f32.xlu0 %v1206
        %v1234 = vpop.xlane.xlu0 %1233
        %1235 = vadd.xlane.f32.xlu0 %v1207
        %v1236 = vpop.xlane.xlu0 %1235
        %1237 = vadd.xlane.f32.xlu0 %v1208
        %v1238 = vpop.xlane.xlu0 %1237
        %1239 = vadd.xlane.f32.xlu0 %v1209
        %v1240 = vpop.xlane.xlu0 %1239
        %1241 = vadd.xlane.f32.xlu0 %v1210
        %v1242 = vpop.xlane.xlu0 %1241
        %1243 = vadd.xlane.f32.xlu0 %v1211
        %v1244 = vpop.xlane.xlu0 %1243
        %1245 = vadd.xlane.f32.xlu0 %v1212
        %v1246 = vpop.xlane.xlu0 %1245
        %1247 = vadd.xlane.f32.xlu0 %v1213
        %v1248 = vpop.xlane.xlu0 %1247
        %1249 = vadd.xlane.f32.xlu0 %v1214
        %v1250 = vpop.xlane.xlu0 %1249
        %1251 = vadd.xlane.f32.xlu0 %v1215
        %v1252 = vpop.xlane.xlu0 %1251
        %1253 = vadd.xlane.f32.xlu0 %v1216
        %v1254 = vpop.xlane.xlu0 %1253
        %v1255 = vld [vmem:[#allocation2] sm:$0x1]
        %v1257 = vlaneseq
        %v1258 = vshrl.u32 %v1257, 7
        %v1259 = vsub.s32 0, %v1258
        %v1260 = vrot.slane %v1255, %v1259
        %v1262 = vadd.f32 %v1218, %v1260
        %v1263 = vadd.f32 %v1220, %v1260
        %v1264 = vadd.f32 %v1222, %v1260
        %v1265 = vadd.f32 %v1224, %v1260
        %v1266 = vadd.f32 %v1226, %v1260
        %v1267 = vadd.f32 %v1228, %v1260
        %v1268 = vadd.f32 %v1230, %v1260
        %v1269 = vadd.f32 %v1232, %v1260
        %v1270 = vadd.f32 %v1234, %v1260
        %v1271 = vadd.f32 %v1236, %v1260
        %v1272 = vadd.f32 %v1238, %v1260
        %v1273 = vadd.f32 %v1240, %v1260
        %v1274 = vadd.f32 %v1242, %v1260
        %v1275 = vadd.f32 %v1244, %v1260
        %v1276 = vadd.f32 %v1246, %v1260
        %v1277 = vadd.f32 %v1248, %v1260
        %v1278 = vadd.f32 %v1250, %v1260
        %v1279 = vadd.f32 %v1252, %v1260
        %v1280 = vadd.f32 %v1254, %v1260
        %vm1281 = vcmask 7168
        %1282 = vst.msk [vmem:[%s263] sm:$0xff] %vm1281, %v1262
        %1283 = vst.msk [vmem:[%s263 + $0x8] sm:$0xff] %vm1281, %v1263
        %1284 = vst.msk [vmem:[%s263 + $0x10] sm:$0xff] %vm1281, %v1264
        %1285 = vst.msk [vmem:[%s263 + $0x18] sm:$0xff] %vm1281, %v1265
        %1286 = vst.msk [vmem:[%s263 + $0x20] sm:$0xff] %vm1281, %v1266
        %1287 = vst.msk [vmem:[%s263 + $0x28] sm:$0xff] %vm1281, %v1267
        %1288 = vst.msk [vmem:[%s263 + $0x30] sm:$0xff] %vm1281, %v1268
        %1289 = vst.msk [vmem:[%s263 + $0x38] sm:$0xff] %vm1281, %v1269
        %1290 = vst.msk [vmem:[%s263 + $0x40] sm:$0xff] %vm1281, %v1270
        %1291 = vst.msk [vmem:[%s263 + $0x48] sm:$0xff] %vm1281, %v1271
        %1292 = vst.msk [vmem:[%s263 + $0x50] sm:$0xff] %vm1281, %v1272
        %1293 = vst.msk [vmem:[%s263 + $0x58] sm:$0xff] %vm1281, %v1273
        %1294 = vst.msk [vmem:[%s263 + $0x60] sm:$0xff] %vm1281, %v1274
        %1295 = vst.msk [vmem:[%s263 + $0x68] sm:$0xff] %vm1281, %v1275
        %1296 = vst.msk [vmem:[%s263 + $0x70] sm:$0xff] %vm1281, %v1276
        %1297 = vst.msk [vmem:[%s263 + $0x78] sm:$0xff] %vm1281, %v1277
        %1298 = vst.msk [vmem:[%s263 + $0x80] sm:$0xff] %vm1281, %v1278
        %1299 = vst.msk [vmem:[%s263 + $0x88] sm:$0xff] %vm1281, %v1279
        %1300 = vst.msk [vmem:[%s263 + $0x90] sm:$0xff] %vm1281, %v1280
        %s1301 = smul.u32 19, %s22
        %p1302 = scmp.lt.s32.totalorder %s1301, 37
        %s1303 = scalar_select %p1302, %s1301, 37
        %s1304 = smul.addr %s1303, 8
        %s1305 = scalar_lea.vmem %s5, %s1304
        // Predicated region
        $region49: #{tpu_custom_call.1} parent=39 // pred_check
          %p1306 = pneg %p150
        $region50: #{tpu_custom_call.1} parent=39 // pred_check_branch
          %1308 = sbr.rel (%p1306) target = $region52
        $region51: #{tpu_custom_call.1} parent=39 // pred_region
          %s1309 = smul.u32 19, %s22
        $region52: #{tpu_custom_call.1} parent=39 // pred_fallthru
          _
      $region40: #{tpu_custom_call.1} parent=5 // pred_fallthru
        _
      %p1310 = scmp.le.s32.totalorder 2, %s17
      // Predicated region
      $region53: #{tpu_custom_call.1} parent=5 // pred_check
        %p1311 = pneg %p1310
      $region54: #{tpu_custom_call.1} parent=5 // pred_check_branch
        %1313 = sbr.rel (%p1311) target = $region56
      $region55: #{tpu_custom_call.1} parent=5 // pred_region
        %s1314 = ssub.s32 %s17, 2
        // Predicated region
        $region57: #{tpu_custom_call.1} parent=55 // pred_check
          %p1315 = pneg %p156
        $region58: #{tpu_custom_call.1} parent=55 // pred_check_branch
          %1317 = sbr.rel (%p1315) target = $region60
        $region59: #{tpu_custom_call.1} parent=55 // pred_region
          %s1318 = smul.u32 19, %s23
          %p1319 = scmp.lt.s32.totalorder %s1318, 37
          %s1320 = scalar_select %p1319, %s1318, 37
          %s1321 = smul.addr %s1320, 8
          %s1322 = scalar_lea.vmem %s5, %s1321
        $region60: #{tpu_custom_call.1} parent=55 // pred_fallthru
          _
      $region56: #{tpu_custom_call.1} parent=5 // pred_fallthru
        _
    $region6: #{tpu_custom_call.1} parent=1 // loop_footer
      %s21 = sadd.s32 1, %s17
    $region7: #{tpu_custom_call.1} parent=1 // loop_footer_branch
      %16 = sbr.rel target = $region3
    $region8: #{tpu_custom_call.1} parent=1 // loop_exit
      _
    %1323 = vsyncpa [#allocation4], 1
    %s1324 = scalar_lea.sflag [#allocation4], 1
    %1325 = vsyncpa %s1324, 1
    %1326 = vsyncpa [#allocation6], 1

</llo_original>
